<compile_context>
chip_gen: v7x
topology: tpu7x:2x2x1
jax: 0.10.0
libtpu: 0.0.40
codegen_flags: <defaults>
</compile_context>

<pallas_src>
import functools

import numpy as np
import jax
import jax.numpy as jnp
from jax import lax
from jax.experimental import pallas as pl
from jax.experimental.pallas import tpu as pltpu

SEQ2VEC_DIM = 2400   # skip-thoughts sentence-vector width (nn.Linear in_features)
EMBED = 32           # opt['embed']['embed_dim'] for the demo
LANE = 128
SUBLANE = 8


def _round_up(x, m):
    return (x + m - 1) // m * m


# ----------------------------------------------------------------------------- kernel
def _embed_kernel(x_ref, w_ref, b_ref, o_ref):
    # x_ref: [TB, K] f32   (cast to bf16 here -> no extra HBM pass in the wrapper)
    # w_ref: [K, Np] bf16  (resident across grid steps, constant index_map)
    # b_ref: [1, Np] f32
    # o_ref: [TB, Np] out_dtype
    x = x_ref[...].astype(jnp.bfloat16)
    acc = jnp.dot(x, w_ref[...], preferred_element_type=jnp.float32)
    o_ref[...] = jnp.maximum(acc + b_ref[...], 0.0).astype(o_ref.dtype)


# ----------------------------------------------------------------------------- packing
def pack_linear_params(w_out, b_out):
    """One-time (model-init) packing of the PyTorch Linear params.

    w_out: [embed_dim, 2400] f32 (nn.Linear weight layout)
    b_out: [embed_dim] f32
    Returns (w_packed [2400, Np] bf16, b_packed [1, Np] f32) with Np = round_up(E, 128).
    K needs no padding: it is the lane axis of x (full-extent block) and the
    sublane axis of w (2400 % 8 == 0).
    """
    E, K = w_out.shape
    Np = _round_up(E, LANE)
    w_packed = jnp.pad(w_out.T.astype(jnp.bfloat16), ((0, 0), (0, Np - E)))
    b_packed = jnp.pad(b_out.astype(jnp.float32)[None, :], ((0, 0), (0, Np - E)))
    return w_packed, b_packed


# ----------------------------------------------------------------------------- pallas path
def skipthoughts_embedding_pallas(x_t_vec, w_packed, b_packed, *, embed_dim,
                                  block_b=512, out_dtype=jnp.float32):
    """relu(x @ W + b) with pre-packed params via one fused Pallas kernel."""
    B, K = x_t_vec.shape
    Np = w_packed.shape[1]
    assert w_packed.shape[0] == K, "packed weight K mismatch"

    # --- batch tiling ----------------------------------------------------------
    # Respect the per-step tile cap (block_b) and aim for >= 2 grid steps when the
    # batch allows, so v7x's two TensorCores both get work and prefetch/compute
    # overlap exists.  For batches already divisible by the chosen tile (the
    # common case) there is ZERO wrapper-side preprocessing of the activations;
    # ragged batches incur only a rows-only pad (no dtype change, no K pad).
    Bp8 = _round_up(B, SUBLANE)
    steps = pl.cdiv(Bp8, block_b)
    if Bp8 >= 2 * SUBLANE:
        steps = max(steps, 2)
    TB = _round_up(pl.cdiv(Bp8, steps), SUBLANE)
    steps = pl.cdiv(Bp8, TB)
    Bp = steps * TB

    x_p = x_t_vec if Bp == B else jnp.pad(x_t_vec, ((0, Bp - B), (0, 0)))

    out_bytes = jnp.dtype(out_dtype).itemsize
    cost = pl.CostEstimate(
        flops=2 * Bp * K * Np,
        transcendentals=0,
        bytes_accessed=Bp * K * x_p.dtype.itemsize + K * Np * 2 + Np * 4 + Bp * Np * out_bytes,
    )

    out = pl.pallas_call(
        _embed_kernel,
        out_shape=jax.ShapeDtypeStruct((Bp, Np), out_dtype),
        grid=(steps,),
        in_specs=[
            # activations: tiled over batch, full-K block (K == full last dim, no pad)
            pl.BlockSpec((TB, K), lambda i: (i, 0)),
            # weight: constant block index -> stays resident, no re-DMA across steps
            pl.BlockSpec((K, Np), lambda i: (0, 0)),
            # bias: one packed lane-dense tile
            pl.BlockSpec((1, Np), lambda i: (0, 0)),
        ],
        out_specs=pl.BlockSpec((TB, Np), lambda i: (i, 0)),
        compiler_params=pltpu.CompilerParams(
            dimension_semantics=("parallel",),      # shard batch steps across v7x's 2 TCs
            vmem_limit_bytes=64 * 1024 * 1024,      # headroom for block_b up to ~1024 f32 rows
        ),
        cost_estimate=cost,
    )(x_p, w_packed, b_packed)

    # Keep the N=128 padding inside the kernel (unmasked stores); slice outside.
    return out[:B, :embed_dim]


# ----------------------------------------------------------------------------- public wrapper
def skipthoughts_embedding_forward(x_t_vec, w_out, b_out, *, block_b=512,
                                   out_dtype=jnp.float32, min_pallas_rows=SUBLANE):
    """Module forward from PyTorch-layout params (packs weight per call; prefer
    pack_linear_params() + skipthoughts_embedding_pallas() in a real model)."""
    B = x_t_vec.shape[0]
    E = w_out.shape[0]
    if B < min_pallas_rows:
        # Tiny batches are pure fixed overhead for a Pallas launch; XLA's fused
        # GEMV + ReLU wins.
        out = jnp.maximum(jnp.dot(x_t_vec, w_out.T) + b_out, 0.0)
        return out.astype(out_dtype)
    w_packed, b_packed = pack_linear_params(w_out, b_out)
    return skipthoughts_embedding_pallas(
        x_t_vec, w_packed, b_packed, embed_dim=E, block_b=block_b, out_dtype=out_dtype)
    # TODO(synk): training-mode F.dropout (only active when out_dropout >= 0;
    # the module default is -1) is not implemented in the kernel.


def reference(x_t_vec, w_out, b_out):
    # Pure-JAX reference mirroring the PyTorch forward (f32, highest precision).
    logits = jnp.dot(x_t_vec, w_out.T, precision=lax.Precision.HIGHEST) + b_out
    return jnp.maximum(logits, 0.0)


if __name__ == "__main__":
    key = jax.random.PRNGKey(0)
    k1, k2, k3, k4 = jax.random.split(key, 4)

    B = 2
    # TODO(synk): seq2vec (pretrained skip-thoughts GRU encoder over token ids +
    # vocab) has no Pallas equivalent; we model its 2400-d output directly.
    x_t_vec = jax.random.normal(k1, (B, SEQ2VEC_DIM), dtype=jnp.float32)
    w_out = 0.02 * jax.random.normal(k2, (EMBED, SEQ2VEC_DIM), dtype=jnp.float32)
    b_out = 0.02 * jax.random.normal(k3, (EMBED,), dtype=jnp.float32)

    w_packed, b_packed = pack_linear_params(w_out, b_out)
    ref = reference(x_t_vec, w_out, b_out)

    # Force the Pallas path even at the tiny demo batch (the dispatching wrapper
    # would route B=2 to the XLA GEMV fallback).
    pallas_fn = jax.jit(functools.partial(skipthoughts_embedding_pallas, embed_dim=EMBED))
    out = jax.block_until_ready(pallas_fn(x_t_vec, w_packed, b_packed))
    assert out.shape == (B, EMBED)
    # bf16-streamed operands with f32 accumulation: loose-ish tolerance.
    np.testing.assert_allclose(np.asarray(out), np.asarray(ref), rtol=2e-2, atol=2e-2)

    # Also exercise a >=2-step ("parallel") batch grid.
    B2 = 16
    x2 = jax.random.normal(k4, (B2, SEQ2VEC_DIM), dtype=jnp.float32)
    out2 = jax.block_until_ready(pallas_fn(x2, w_packed, b_packed))
    np.testing.assert_allclose(np.asarray(out2), np.asarray(reference(x2, w_out, b_out)),
                               rtol=2e-2, atol=2e-2)

    # Dispatching wrapper (tiny batch -> f32 XLA fallback, tight tolerance).
    out3 = jax.block_until_ready(jax.jit(skipthoughts_embedding_forward)(x_t_vec, w_out, b_out))
    np.testing.assert_allclose(np.asarray(out3), np.asarray(ref), rtol=1e-5, atol=1e-5)

    print("KERNEL_OK")
</pallas_src>

<mosaic_0001>
module attributes {stable_mosaic.version = 11 : i64} {
  func.func @_embed_kernel(%arg0: i32, %arg1: memref<8x2400xf32, #tpu.memory_space<vmem>>, %arg2: memref<2400x128xbf16, #tpu.memory_space<vmem>>, %arg3: memref<1x128xf32, #tpu.memory_space<vmem>>, %arg4: memref<8x128xf32, #tpu.memory_space<vmem>>) attributes {dimension_semantics = [#tpu.dimension_semantics<parallel>], iteration_bounds = array<i64: 1>, scalar_prefetch = 0 : i64, scratch_operands = 0 : i64, tpu.core_type = #tpu.core_type<tc>, window_params = [{transform_indices = @transform_0, window_bounds = array<i64: 8, 2400>}, {pipeline_mode = #tpu.pipeline_mode<synchronous>, transform_indices = @transform_1, window_bounds = array<i64: 2400, 128>}, {pipeline_mode = #tpu.pipeline_mode<synchronous>, transform_indices = @transform_2, window_bounds = array<i64: 1, 128>}, {transform_indices = @transform_3, window_bounds = array<i64: 8, 128>}]} {
    %c0 = arith.constant 0 : index
    %c0_0 = arith.constant 0 : index
    %0 = vector.load %arg1[%c0, %c0_0] : memref<8x2400xf32, #tpu.memory_space<vmem>>, vector<8x2400xf32>
    %1 = arith.truncf %0 : vector<8x2400xf32> to vector<8x2400xbf16>
    %c0_1 = arith.constant 0 : index
    %c0_2 = arith.constant 0 : index
    %2 = vector.load %arg2[%c0_1, %c0_2] : memref<2400x128xbf16, #tpu.memory_space<vmem>>, vector<2400x128xbf16>
    %cst = arith.constant dense<0.000000e+00> : vector<8x128xf32>
    %3 = tpu.matmul %1, %2, %cst {dimension_numbers = #tpu.dot_dimension_numbers<[1], [0], [0], [1], [0, 0, 1, 1], [], []>} : vector<8x2400xbf16>, vector<2400x128xbf16>, vector<8x128xf32> -> vector<8x128xf32>
    %c0_3 = arith.constant 0 : index
    %c0_4 = arith.constant 0 : index
    %4 = vector.load %arg3[%c0_3, %c0_4] : memref<1x128xf32, #tpu.memory_space<vmem>>, vector<1x128xf32>
    %5 = vector.broadcast %4 : vector<1x128xf32> to vector<8x128xf32>
    %6 = arith.addf %3, %5 : vector<8x128xf32>
    %cst_5 = arith.constant 0.000000e+00 : f32
    %7 = vector.broadcast %cst_5 : f32 to vector<8x128xf32>
    %8 = arith.maximumf %6, %7 : vector<8x128xf32>
    %c0_6 = arith.constant 0 : index
    %c0_7 = arith.constant 0 : index
    %9 = vector.load %arg4[%c0_6, %c0_7] : memref<8x128xf32, #tpu.memory_space<vmem>>, vector<8x128xf32>
    tpu.vector_store %arg4[%c0_6, %c0_7], %8 {strides = array<i32>} : memref<8x128xf32, #tpu.memory_space<vmem>>, vector<8x128xf32>,
    return
  }
  func.func @transform_0(%arg0: i32) -> (i32, i32) {
    %c0_i32 = arith.constant 0 : i32
    %c0_i32_0 = arith.constant 0 : i32
    return %arg0, %c0_i32 : i32, i32
  }
  func.func @transform_1(%arg0: i32) -> (i32, i32) {
    %c0_i32 = arith.constant 0 : i32
    %c0_i32_0 = arith.constant 0 : i32
    %c0_i32_1 = arith.constant 0 : i32
    return %c0_i32, %c0_i32_0 : i32, i32
  }
  func.func @transform_2(%arg0: i32) -> (i32, i32) {
    %c0_i32 = arith.constant 0 : i32
    %c0_i32_0 = arith.constant 0 : i32
    %c0_i32_1 = arith.constant 0 : i32
    return %c0_i32, %c0_i32_0 : i32, i32
  }
  func.func @transform_3(%arg0: i32) -> (i32, i32) {
    %c0_i32 = arith.constant 0 : i32
    %c0_i32_0 = arith.constant 0 : i32
    return %arg0, %c0_i32 : i32, i32
  }
}

</mosaic_0001>

<llo_original>
// kernel: skipthoughts_embedding_pallas.1
$region0: #{skipthoughts_embedding_pallas.1}
  #allocation0 [shape = 'u32[]', space=smem, size = 0x4, offset = 0x4, fixed_abs, tag = 'smem constant byte address 0x4 - core index']
  #allocation1 [shape = 'u32[144,128]{1,0:T(1,128)}', space=vmem, size = 0x12000, scoped, tag = 'internal scratch']
  %s0 = inlined_call_operand.hbm [shape: f32[8,2400], index: 0, kind: input, shape index: {}]
  %s1 = inlined_call_operand.hbm [shape: bf16[2400,128], index: 1, kind: input, shape index: {}]
  %s2 = inlined_call_operand.hbm [shape: f32[1,128], index: 2, kind: input, shape index: {}]
  %s3 = inlined_call_operand.hbm [shape: f32[8,128], index: 3, kind: output, shape index: {}]
  %s4 = sld [smem:[#allocation0]]
  $region34: #{skipthoughts_embedding_pallas.1} parent=0
    _
  %s6 = ssub.s32 1, %s4
  %s7 = scalar_select 0, %s6, %s4
  $region1: #{skipthoughts_embedding_pallas.1} parent=0
    #allocation2 [shape = 'u8[77824]{0}', space=vmem, size = 0x13000, scoped, tag = 'input window, operand 0, single buffered']
    #allocation3 [shape = 's32[1]{0}', space=sflag, size = 0x4, scoped, tag = 'scoped memory for skipthoughts_embedding_pallas.1']
    #allocation4 [shape = 's32[1]{0}', space=sflag, size = 0x4, scoped, tag = 'scoped memory for skipthoughts_embedding_pallas.1']
    #allocation5 [shape = 'u8[614400]{0}', space=vmem, size = 0x96000, scoped, tag = 'input window, operand 1, single buffered']
    #allocation6 [shape = 's32[1]{0}', space=sflag, size = 0x4, scoped, tag = 'scoped memory for skipthoughts_embedding_pallas.1']
    #allocation7 [shape = 'u8[512]{0}', space=vmem, size = 0x400, scoped, tag = 'input window, operand 2, single buffered']
    #allocation8 [shape = 'u8[4096]{0}', space=vmem, size = 0x1000, scoped, tag = 'output window, operand 0, single buffered']
    %8 = vsyncpa [#allocation3], 0
    %9 = vsyncpa [#allocation6], 0
    %10 = vsyncpa [#allocation4], 0
    // Predicated region
    $region2: #{skipthoughts_embedding_pallas.1} parent=1 // pred_check
      _
    $region3: #{skipthoughts_embedding_pallas.1} parent=1 // pred_check_branch
      %12 = sbr.rel (0) target = $region5
    $region4: #{skipthoughts_embedding_pallas.1} parent=1 // pred_region
      %s14 = ssub.s32 2432, 2432
      %15 = vsyncadd [#allocation3], %s14
      %s17 = sshll.u32 [#allocation2], 4
      %s18 = int_to_ptr.vmem [resolvable:$true] %s17
      %20 = dma.hbm_to_vmem [thread:$0]  %s0, 2432, %s18, [#allocation3]
    $region5: #{skipthoughts_embedding_pallas.1} parent=1 // pred_fallthru
      _
    // Predicated region
    $region6: #{skipthoughts_embedding_pallas.1} parent=1 // pred_check
      _
    $region7: #{skipthoughts_embedding_pallas.1} parent=1 // pred_check_branch
      %22 = sbr.rel (0) target = $region9
    $region8: #{skipthoughts_embedding_pallas.1} parent=1 // pred_region
      %s24 = ssub.s32 19200, 19200
      %25 = vsyncadd [#allocation6], %s24
      %s26 = sshll.u32 [#allocation5], 4
      %s27 = int_to_ptr.vmem [resolvable:$true] %s26
      %32 = dma.hbm_to_vmem [thread:$0]  %s1, 19200, %s27, [#allocation6], 64, 64, 4
    $region9: #{skipthoughts_embedding_pallas.1} parent=1 // pred_fallthru
      _
    // Predicated region
    $region10: #{skipthoughts_embedding_pallas.1} parent=1 // pred_check
      _
    $region11: #{skipthoughts_embedding_pallas.1} parent=1 // pred_check_branch
      %34 = sbr.rel (0) target = $region13
    $region12: #{skipthoughts_embedding_pallas.1} parent=1 // pred_region
      %s36 = ssub.s32 16, 16
      %37 = vsyncadd [#allocation6], %s36
      %s39 = sshll.u32 [#allocation7], 4
      %s40 = int_to_ptr.vmem [resolvable:$true] %s39
      %42 = dma.hbm_to_vmem [thread:$0]  %s2, 16, %s40, [#allocation6]
    $region13: #{skipthoughts_embedding_pallas.1} parent=1 // pred_fallthru
      _
    // Predicated region
    $region14: #{skipthoughts_embedding_pallas.1} parent=1 // pred_check
      _
    $region15: #{skipthoughts_embedding_pallas.1} parent=1 // pred_check_branch
      %44 = sbr.rel (0) target = $region17
    $region16: #{skipthoughts_embedding_pallas.1} parent=1 // pred_region
      %45 = dma.done [#allocation3], 2432
    $region17: #{skipthoughts_embedding_pallas.1} parent=1 // pred_fallthru
      _
    // Predicated region
    $region18: #{skipthoughts_embedding_pallas.1} parent=1 // pred_check
      _
    $region19: #{skipthoughts_embedding_pallas.1} parent=1 // pred_check_branch
      %47 = sbr.rel (0) target = $region21
    $region20: #{skipthoughts_embedding_pallas.1} parent=1 // pred_region
      %48 = dma.done [#allocation6], 19200
    $region21: #{skipthoughts_embedding_pallas.1} parent=1 // pred_fallthru
      _
    // Predicated region
    $region22: #{skipthoughts_embedding_pallas.1} parent=1 // pred_check
      _
    $region23: #{skipthoughts_embedding_pallas.1} parent=1 // pred_check_branch
      %50 = sbr.rel (0) target = $region25
    $region24: #{skipthoughts_embedding_pallas.1} parent=1 // pred_region
      %51 = dma.done [#allocation6], 16
    $region25: #{skipthoughts_embedding_pallas.1} parent=1 // pred_fallthru
      _
    %v53 = vld [vmem:[#allocation2] sm:$0xff]
    %v54 = vld [vmem:[#allocation2 + $0x8] sm:$0xff]
    %v55 = vld [vmem:[#allocation2 + $0x10] sm:$0xff]
    %v56 = vld [vmem:[#allocation2 + $0x18] sm:$0xff]
    %v57 = vld [vmem:[#allocation2 + $0x20] sm:$0xff]
    %v58 = vld [vmem:[#allocation2 + $0x28] sm:$0xff]
    %v59 = vld [vmem:[#allocation2 + $0x30] sm:$0xff]
    %v60 = vld [vmem:[#allocation2 + $0x38] sm:$0xff]
    %v61 = vld [vmem:[#allocation2 + $0x40] sm:$0xff]
    %v62 = vld [vmem:[#allocation2 + $0x48] sm:$0xff]
    %v63 = vld [vmem:[#allocation2 + $0x50] sm:$0xff]
    %v64 = vld [vmem:[#allocation2 + $0x58] sm:$0xff]
    %v65 = vld [vmem:[#allocation2 + $0x60] sm:$0xff]
    %v66 = vld [vmem:[#allocation2 + $0x68] sm:$0xff]
    %v67 = vld [vmem:[#allocation2 + $0x70] sm:$0xff]
    %v68 = vld [vmem:[#allocation2 + $0x78] sm:$0xff]
    %v69 = vld [vmem:[#allocation2 + $0x80] sm:$0xff]
    %v70 = vld [vmem:[#allocation2 + $0x88] sm:$0xff]
    %v71 = vld [vmem:[#allocation2 + $0x90] sm:$0xff]
    %v72 = vpack.c.bf16 %v53, %v53
    %v73 = vpack.c.bf16 %v54, %v54
    %v74 = vpack.c.bf16 %v55, %v55
    %v75 = vpack.c.bf16 %v56, %v56
    %v76 = vpack.c.bf16 %v57, %v57
    %v77 = vpack.c.bf16 %v58, %v58
    %v78 = vpack.c.bf16 %v59, %v59
    %v79 = vpack.c.bf16 %v60, %v60
    %v80 = vpack.c.bf16 %v61, %v61
    %v81 = vpack.c.bf16 %v62, %v62
    %v82 = vpack.c.bf16 %v63, %v63
    %v83 = vpack.c.bf16 %v64, %v64
    %v84 = vpack.c.bf16 %v65, %v65
    %v85 = vpack.c.bf16 %v66, %v66
    %v86 = vpack.c.bf16 %v67, %v67
    %v87 = vpack.c.bf16 %v68, %v68
    %v88 = vpack.c.bf16 %v69, %v69
    %v89 = vpack.c.bf16 %v70, %v70
    %v90 = vpack.c.bf16 %v71, %v71
    %v91 = vld [vmem:[#allocation5] sm:$0xf]
    %v92 = vld [vmem:[#allocation5 + $0x4] sm:$0xf]
    %v93 = vld [vmem:[#allocation5 + $0x8] sm:$0xf]
    %v94 = vld [vmem:[#allocation5 + $0xc] sm:$0xf]
    %v95 = vld [vmem:[#allocation5 + $0x10] sm:$0xf]
    %v96 = vld [vmem:[#allocation5 + $0x14] sm:$0xf]
    %v97 = vld [vmem:[#allocation5 + $0x18] sm:$0xf]
    %v98 = vld [vmem:[#allocation5 + $0x1c] sm:$0xf]
    %v99 = vld [vmem:[#allocation5 + $0x20] sm:$0xf]
    %v100 = vld [vmem:[#allocation5 + $0x24] sm:$0xf]
    %v101 = vld [vmem:[#allocation5 + $0x28] sm:$0xf]
    %v102 = vld [vmem:[#allocation5 + $0x2c] sm:$0xf]
    %v103 = vld [vmem:[#allocation5 + $0x30] sm:$0xf]
    %v104 = vld [vmem:[#allocation5 + $0x34] sm:$0xf]
    %v105 = vld [vmem:[#allocation5 + $0x38] sm:$0xf]
    %v106 = vld [vmem:[#allocation5 + $0x3c] sm:$0xf]
    %v107 = vld [vmem:[#allocation5 + $0x40] sm:$0xf]
    %v108 = vld [vmem:[#allocation5 + $0x44] sm:$0xf]
    %v109 = vld [vmem:[#allocation5 + $0x48] sm:$0xf]
    %v110 = vld [vmem:[#allocation5 + $0x4c] sm:$0xf]
    %v111 = vld [vmem:[#allocation5 + $0x50] sm:$0xf]
    %v112 = vld [vmem:[#allocation5 + $0x54] sm:$0xf]
    %v113 = vld [vmem:[#allocation5 + $0x58] sm:$0xf]
    %v114 = vld [vmem:[#allocation5 + $0x5c] sm:$0xf]
    %v115 = vld [vmem:[#allocation5 + $0x60] sm:$0xf]
    %v116 = vld [vmem:[#allocation5 + $0x64] sm:$0xf]
    %v117 = vld [vmem:[#allocation5 + $0x68] sm:$0xf]
    %v118 = vld [vmem:[#allocation5 + $0x6c] sm:$0xf]
    %v119 = vld [vmem:[#allocation5 + $0x70] sm:$0xf]
    %v120 = vld [vmem:[#allocation5 + $0x74] sm:$0xf]
    %v121 = vld [vmem:[#allocation5 + $0x78] sm:$0xf]
    %v122 = vld [vmem:[#allocation5 + $0x7c] sm:$0xf]
    %v123 = vld [vmem:[#allocation5 + $0x80] sm:$0xf]
    %v124 = vld [vmem:[#allocation5 + $0x84] sm:$0xf]
    %v125 = vld [vmem:[#allocation5 + $0x88] sm:$0xf]
    %v126 = vld [vmem:[#allocation5 + $0x8c] sm:$0xf]
    %v127 = vld [vmem:[#allocation5 + $0x90] sm:$0xf]
    %v128 = vld [vmem:[#allocation5 + $0x94] sm:$0xf]
    %v129 = vld [vmem:[#allocation5 + $0x98] sm:$0xf]
    %v130 = vld [vmem:[#allocation5 + $0x9c] sm:$0xf]
    %v131 = vld [vmem:[#allocation5 + $0xa0] sm:$0xf]
    %v132 = vld [vmem:[#allocation5 + $0xa4] sm:$0xf]
    %v133 = vld [vmem:[#allocation5 + $0xa8] sm:$0xf]
    %v134 = vld [vmem:[#allocation5 + $0xac] sm:$0xf]
    %v135 = vld [vmem:[#allocation5 + $0xb0] sm:$0xf]
    %v136 = vld [vmem:[#allocation5 + $0xb4] sm:$0xf]
    %v137 = vld [vmem:[#allocation5 + $0xb8] sm:$0xf]
    %v138 = vld [vmem:[#allocation5 + $0xbc] sm:$0xf]
    %v139 = vld [vmem:[#allocation5 + $0xc0] sm:$0xf]
    %v140 = vld [vmem:[#allocation5 + $0xc4] sm:$0xf]
    %v141 = vld [vmem:[#allocation5 + $0xc8] sm:$0xf]
    %v142 = vld [vmem:[#allocation5 + $0xcc] sm:$0xf]
    %v143 = vld [vmem:[#allocation5 + $0xd0] sm:$0xf]
    %v144 = vld [vmem:[#allocation5 + $0xd4] sm:$0xf]
    %v145 = vld [vmem:[#allocation5 + $0xd8] sm:$0xf]
    %v146 = vld [vmem:[#allocation5 + $0xdc] sm:$0xf]
    %v147 = vld [vmem:[#allocation5 + $0xe0] sm:$0xf]
    %v148 = vld [vmem:[#allocation5 + $0xe4] sm:$0xf]
    %v149 = vld [vmem:[#allocation5 + $0xe8] sm:$0xf]
    %v150 = vld [vmem:[#allocation5 + $0xec] sm:$0xf]
    %v151 = vld [vmem:[#allocation5 + $0xf0] sm:$0xf]
    %v152 = vld [vmem:[#allocation5 + $0xf4] sm:$0xf]
    %v153 = vld [vmem:[#allocation5 + $0xf8] sm:$0xf]
    %v154 = vld [vmem:[#allocation5 + $0xfc] sm:$0xf]
    %v155 = vld [vmem:[#allocation5 + $0x100] sm:$0xf]
    %v156 = vld [vmem:[#allocation5 + $0x104] sm:$0xf]
    %v157 = vld [vmem:[#allocation5 + $0x108] sm:$0xf]
    %v158 = vld [vmem:[#allocation5 + $0x10c] sm:$0xf]
    %v159 = vld [vmem:[#allocation5 + $0x110] sm:$0xf]
    %v160 = vld [vmem:[#allocation5 + $0x114] sm:$0xf]
    %v161 = vld [vmem:[#allocation5 + $0x118] sm:$0xf]
    %v162 = vld [vmem:[#allocation5 + $0x11c] sm:$0xf]
    %v163 = vld [vmem:[#allocation5 + $0x120] sm:$0xf]
    %v164 = vld [vmem:[#allocation5 + $0x124] sm:$0xf]
    %v165 = vld [vmem:[#allocation5 + $0x128] sm:$0xf]
    %v166 = vld [vmem:[#allocation5 + $0x12c] sm:$0xf]
    %v167 = vld [vmem:[#allocation5 + $0x130] sm:$0xf]
    %v168 = vld [vmem:[#allocation5 + $0x134] sm:$0xf]
    %v169 = vld [vmem:[#allocation5 + $0x138] sm:$0xf]
    %v170 = vld [vmem:[#allocation5 + $0x13c] sm:$0xf]
    %v171 = vld [vmem:[#allocation5 + $0x140] sm:$0xf]
    %v172 = vld [vmem:[#allocation5 + $0x144] sm:$0xf]
    %v173 = vld [vmem:[#allocation5 + $0x148] sm:$0xf]
    %v174 = vld [vmem:[#allocation5 + $0x14c] sm:$0xf]
    %v175 = vld [vmem:[#allocation5 + $0x150] sm:$0xf]
    %v176 = vld [vmem:[#allocation5 + $0x154] sm:$0xf]
    %v177 = vld [vmem:[#allocation5 + $0x158] sm:$0xf]
    %v178 = vld [vmem:[#allocation5 + $0x15c] sm:$0xf]
    %v179 = vld [vmem:[#allocation5 + $0x160] sm:$0xf]
    %v180 = vld [vmem:[#allocation5 + $0x164] sm:$0xf]
    %v181 = vld [vmem:[#allocation5 + $0x168] sm:$0xf]
    %v182 = vld [vmem:[#allocation5 + $0x16c] sm:$0xf]
    %v183 = vld [vmem:[#allocation5 + $0x170] sm:$0xf]
    %v184 = vld [vmem:[#allocation5 + $0x174] sm:$0xf]
    %v185 = vld [vmem:[#allocation5 + $0x178] sm:$0xf]
    %v186 = vld [vmem:[#allocation5 + $0x17c] sm:$0xf]
    %v187 = vld [vmem:[#allocation5 + $0x180] sm:$0xf]
    %v188 = vld [vmem:[#allocation5 + $0x184] sm:$0xf]
    %v189 = vld [vmem:[#allocation5 + $0x188] sm:$0xf]
    %v190 = vld [vmem:[#allocation5 + $0x18c] sm:$0xf]
    %v191 = vld [vmem:[#allocation5 + $0x190] sm:$0xf]
    %v192 = vld [vmem:[#allocation5 + $0x194] sm:$0xf]
    %v193 = vld [vmem:[#allocation5 + $0x198] sm:$0xf]
    %v194 = vld [vmem:[#allocation5 + $0x19c] sm:$0xf]
    %v195 = vld [vmem:[#allocation5 + $0x1a0] sm:$0xf]
    %v196 = vld [vmem:[#allocation5 + $0x1a4] sm:$0xf]
    %v197 = vld [vmem:[#allocation5 + $0x1a8] sm:$0xf]
    %v198 = vld [vmem:[#allocation5 + $0x1ac] sm:$0xf]
    %v199 = vld [vmem:[#allocation5 + $0x1b0] sm:$0xf]
    %v200 = vld [vmem:[#allocation5 + $0x1b4] sm:$0xf]
    %v201 = vld [vmem:[#allocation5 + $0x1b8] sm:$0xf]
    %v202 = vld [vmem:[#allocation5 + $0x1bc] sm:$0xf]
    %v203 = vld [vmem:[#allocation5 + $0x1c0] sm:$0xf]
    %v204 = vld [vmem:[#allocation5 + $0x1c4] sm:$0xf]
    %v205 = vld [vmem:[#allocation5 + $0x1c8] sm:$0xf]
    %v206 = vld [vmem:[#allocation5 + $0x1cc] sm:$0xf]
    %v207 = vld [vmem:[#allocation5 + $0x1d0] sm:$0xf]
    %v208 = vld [vmem:[#allocation5 + $0x1d4] sm:$0xf]
    %v209 = vld [vmem:[#allocation5 + $0x1d8] sm:$0xf]
    %v210 = vld [vmem:[#allocation5 + $0x1dc] sm:$0xf]
    %v211 = vld [vmem:[#allocation5 + $0x1e0] sm:$0xf]
    %v212 = vld [vmem:[#allocation5 + $0x1e4] sm:$0xf]
    %v213 = vld [vmem:[#allocation5 + $0x1e8] sm:$0xf]
    %v214 = vld [vmem:[#allocation5 + $0x1ec] sm:$0xf]
    %v215 = vld [vmem:[#allocation5 + $0x1f0] sm:$0xf]
    %v216 = vld [vmem:[#allocation5 + $0x1f4] sm:$0xf]
    %v217 = vld [vmem:[#allocation5 + $0x1f8] sm:$0xf]
    %v218 = vld [vmem:[#allocation5 + $0x1fc] sm:$0xf]
    %v219 = vld [vmem:[#allocation5 + $0x200] sm:$0xf]
    %v220 = vld [vmem:[#allocation5 + $0x204] sm:$0xf]
    %v221 = vld [vmem:[#allocation5 + $0x208] sm:$0xf]
    %v222 = vld [vmem:[#allocation5 + $0x20c] sm:$0xf]
    %v223 = vld [vmem:[#allocation5 + $0x210] sm:$0xf]
    %v224 = vld [vmem:[#allocation5 + $0x214] sm:$0xf]
    %v225 = vld [vmem:[#allocation5 + $0x218] sm:$0xf]
    %v226 = vld [vmem:[#allocation5 + $0x21c] sm:$0xf]
    %v227 = vld [vmem:[#allocation5 + $0x220] sm:$0xf]
    %v228 = vld [vmem:[#allocation5 + $0x224] sm:$0xf]
    %v229 = vld [vmem:[#allocation5 + $0x228] sm:$0xf]
    %v230 = vld [vmem:[#allocation5 + $0x22c] sm:$0xf]
    %v231 = vld [vmem:[#allocation5 + $0x230] sm:$0xf]
    %v232 = vld [vmem:[#allocation5 + $0x234] sm:$0xf]
    %v233 = vld [vmem:[#allocation5 + $0x238] sm:$0xf]
    %v234 = vld [vmem:[#allocation5 + $0x23c] sm:$0xf]
    %v235 = vld [vmem:[#allocation5 + $0x240] sm:$0xf]
    %v236 = vld [vmem:[#allocation5 + $0x244] sm:$0xf]
    %v237 = vld [vmem:[#allocation5 + $0x248] sm:$0xf]
    %v238 = vld [vmem:[#allocation5 + $0x24c] sm:$0xf]
    %v239 = vld [vmem:[#allocation5 + $0x250] sm:$0xf]
    %v240 = vld [vmem:[#allocation5 + $0x254] sm:$0xf]
    %v241 = vld [vmem:[#allocation5 + $0x258] sm:$0xf]
    %v242 = vld [vmem:[#allocation5 + $0x25c] sm:$0xf]
    %v243 = vld [vmem:[#allocation5 + $0x260] sm:$0xf]
    %v244 = vld [vmem:[#allocation5 + $0x264] sm:$0xf]
    %v245 = vld [vmem:[#allocation5 + $0x268] sm:$0xf]
    %v246 = vld [vmem:[#allocation5 + $0x26c] sm:$0xf]
    %v247 = vld [vmem:[#allocation5 + $0x270] sm:$0xf]
    %v248 = vld [vmem:[#allocation5 + $0x274] sm:$0xf]
    %v249 = vld [vmem:[#allocation5 + $0x278] sm:$0xf]
    %v250 = vld [vmem:[#allocation5 + $0x27c] sm:$0xf]
    %v251 = vld [vmem:[#allocation5 + $0x280] sm:$0xf]
    %v252 = vld [vmem:[#allocation5 + $0x284] sm:$0xf]
    %v253 = vld [vmem:[#allocation5 + $0x288] sm:$0xf]
    %v254 = vld [vmem:[#allocation5 + $0x28c] sm:$0xf]
    %v255 = vld [vmem:[#allocation5 + $0x290] sm:$0xf]
    %v256 = vld [vmem:[#allocation5 + $0x294] sm:$0xf]
    %v257 = vld [vmem:[#allocation5 + $0x298] sm:$0xf]
    %v258 = vld [vmem:[#allocation5 + $0x29c] sm:$0xf]
    %v259 = vld [vmem:[#allocation5 + $0x2a0] sm:$0xf]
    %v260 = vld [vmem:[#allocation5 + $0x2a4] sm:$0xf]
    %v261 = vld [vmem:[#allocation5 + $0x2a8] sm:$0xf]
    %v262 = vld [vmem:[#allocation5 + $0x2ac] sm:$0xf]
    %v263 = vld [vmem:[#allocation5 + $0x2b0] sm:$0xf]
    %v264 = vld [vmem:[#allocation5 + $0x2b4] sm:$0xf]
    %v265 = vld [vmem:[#allocation5 + $0x2b8] sm:$0xf]
    %v266 = vld [vmem:[#allocation5 + $0x2bc] sm:$0xf]
    %v267 = vld [vmem:[#allocation5 + $0x2c0] sm:$0xf]
    %v268 = vld [vmem:[#allocation5 + $0x2c4] sm:$0xf]
    %v269 = vld [vmem:[#allocation5 + $0x2c8] sm:$0xf]
    %v270 = vld [vmem:[#allocation5 + $0x2cc] sm:$0xf]
    %v271 = vld [vmem:[#allocation5 + $0x2d0] sm:$0xf]
    %v272 = vld [vmem:[#allocation5 + $0x2d4] sm:$0xf]
    %v273 = vld [vmem:[#allocation5 + $0x2d8] sm:$0xf]
    %v274 = vld [vmem:[#allocation5 + $0x2dc] sm:$0xf]
    %v275 = vld [vmem:[#allocation5 + $0x2e0] sm:$0xf]
    %v276 = vld [vmem:[#allocation5 + $0x2e4] sm:$0xf]
    %v277 = vld [vmem:[#allocation5 + $0x2e8] sm:$0xf]
    %v278 = vld [vmem:[#allocation5 + $0x2ec] sm:$0xf]
    %v279 = vld [vmem:[#allocation5 + $0x2f0] sm:$0xf]
    %v280 = vld [vmem:[#allocation5 + $0x2f4] sm:$0xf]
    %v281 = vld [vmem:[#allocation5 + $0x2f8] sm:$0xf]
    %v282 = vld [vmem:[#allocation5 + $0x2fc] sm:$0xf]
    %v283 = vld [vmem:[#allocation5 + $0x300] sm:$0xf]
    %v284 = vld [vmem:[#allocation5 + $0x304] sm:$0xf]
    %v285 = vld [vmem:[#allocation5 + $0x308] sm:$0xf]
    %v286 = vld [vmem:[#allocation5 + $0x30c] sm:$0xf]
    %v287 = vld [vmem:[#allocation5 + $0x310] sm:$0xf]
    %v288 = vld [vmem:[#allocation5 + $0x314] sm:$0xf]
    %v289 = vld [vmem:[#allocation5 + $0x318] sm:$0xf]
    %v290 = vld [vmem:[#allocation5 + $0x31c] sm:$0xf]
    %v291 = vld [vmem:[#allocation5 + $0x320] sm:$0xf]
    %v292 = vld [vmem:[#allocation5 + $0x324] sm:$0xf]
    %v293 = vld [vmem:[#allocation5 + $0x328] sm:$0xf]
    %v294 = vld [vmem:[#allocation5 + $0x32c] sm:$0xf]
    %v295 = vld [vmem:[#allocation5 + $0x330] sm:$0xf]
    %v296 = vld [vmem:[#allocation5 + $0x334] sm:$0xf]
    %v297 = vld [vmem:[#allocation5 + $0x338] sm:$0xf]
    %v298 = vld [vmem:[#allocation5 + $0x33c] sm:$0xf]
    %v299 = vld [vmem:[#allocation5 + $0x340] sm:$0xf]
    %v300 = vld [vmem:[#allocation5 + $0x344] sm:$0xf]
    %v301 = vld [vmem:[#allocation5 + $0x348] sm:$0xf]
    %v302 = vld [vmem:[#allocation5 + $0x34c] sm:$0xf]
    %v303 = vld [vmem:[#allocation5 + $0x350] sm:$0xf]
    %v304 = vld [vmem:[#allocation5 + $0x354] sm:$0xf]
    %v305 = vld [vmem:[#allocation5 + $0x358] sm:$0xf]
    %v306 = vld [vmem:[#allocation5 + $0x35c] sm:$0xf]
    %v307 = vld [vmem:[#allocation5 + $0x360] sm:$0xf]
    %v308 = vld [vmem:[#allocation5 + $0x364] sm:$0xf]
    %v309 = vld [vmem:[#allocation5 + $0x368] sm:$0xf]
    %v310 = vld [vmem:[#allocation5 + $0x36c] sm:$0xf]
    %v311 = vld [vmem:[#allocation5 + $0x370] sm:$0xf]
    %v312 = vld [vmem:[#allocation5 + $0x374] sm:$0xf]
    %v313 = vld [vmem:[#allocation5 + $0x378] sm:$0xf]
    %v314 = vld [vmem:[#allocation5 + $0x37c] sm:$0xf]
    %v315 = vld [vmem:[#allocation5 + $0x380] sm:$0xf]
    %v316 = vld [vmem:[#allocation5 + $0x384] sm:$0xf]
    %v317 = vld [vmem:[#allocation5 + $0x388] sm:$0xf]
    %v318 = vld [vmem:[#allocation5 + $0x38c] sm:$0xf]
    %v319 = vld [vmem:[#allocation5 + $0x390] sm:$0xf]
    %v320 = vld [vmem:[#allocation5 + $0x394] sm:$0xf]
    %v321 = vld [vmem:[#allocation5 + $0x398] sm:$0xf]
    %v322 = vld [vmem:[#allocation5 + $0x39c] sm:$0xf]
    %v323 = vld [vmem:[#allocation5 + $0x3a0] sm:$0xf]
    %v324 = vld [vmem:[#allocation5 + $0x3a4] sm:$0xf]
    %v325 = vld [vmem:[#allocation5 + $0x3a8] sm:$0xf]
    %v326 = vld [vmem:[#allocation5 + $0x3ac] sm:$0xf]
    %v327 = vld [vmem:[#allocation5 + $0x3b0] sm:$0xf]
    %v328 = vld [vmem:[#allocation5 + $0x3b4] sm:$0xf]
    %v329 = vld [vmem:[#allocation5 + $0x3b8] sm:$0xf]
    %v330 = vld [vmem:[#allocation5 + $0x3bc] sm:$0xf]
    %v331 = vld [vmem:[#allocation5 + $0x3c0] sm:$0xf]
    %v332 = vld [vmem:[#allocation5 + $0x3c4] sm:$0xf]
    %v333 = vld [vmem:[#allocation5 + $0x3c8] sm:$0xf]
    %v334 = vld [vmem:[#allocation5 + $0x3cc] sm:$0xf]
    %v335 = vld [vmem:[#allocation5 + $0x3d0] sm:$0xf]
    %v336 = vld [vmem:[#allocation5 + $0x3d4] sm:$0xf]
    %v337 = vld [vmem:[#allocation5 + $0x3d8] sm:$0xf]
    %v338 = vld [vmem:[#allocation5 + $0x3dc] sm:$0xf]
    %v339 = vld [vmem:[#allocation5 + $0x3e0] sm:$0xf]
    %v340 = vld [vmem:[#allocation5 + $0x3e4] sm:$0xf]
    %v341 = vld [vmem:[#allocation5 + $0x3e8] sm:$0xf]
    %v342 = vld [vmem:[#allocation5 + $0x3ec] sm:$0xf]
    %v343 = vld [vmem:[#allocation5 + $0x3f0] sm:$0xf]
    %v344 = vld [vmem:[#allocation5 + $0x3f4] sm:$0xf]
    %v345 = vld [vmem:[#allocation5 + $0x3f8] sm:$0xf]
    %v346 = vld [vmem:[#allocation5 + $0x3fc] sm:$0xf]
    %v347 = vld [vmem:[#allocation5 + $0x400] sm:$0xf]
    %v348 = vld [vmem:[#allocation5 + $0x404] sm:$0xf]
    %v349 = vld [vmem:[#allocation5 + $0x408] sm:$0xf]
    %v350 = vld [vmem:[#allocation5 + $0x40c] sm:$0xf]
    %v351 = vld [vmem:[#allocation5 + $0x410] sm:$0xf]
    %v352 = vld [vmem:[#allocation5 + $0x414] sm:$0xf]
    %v353 = vld [vmem:[#allocation5 + $0x418] sm:$0xf]
    %v354 = vld [vmem:[#allocation5 + $0x41c] sm:$0xf]
    %v355 = vld [vmem:[#allocation5 + $0x420] sm:$0xf]
    %v356 = vld [vmem:[#allocation5 + $0x424] sm:$0xf]
    %v357 = vld [vmem:[#allocation5 + $0x428] sm:$0xf]
    %v358 = vld [vmem:[#allocation5 + $0x42c] sm:$0xf]
    %v359 = vld [vmem:[#allocation5 + $0x430] sm:$0xf]
    %v360 = vld [vmem:[#allocation5 + $0x434] sm:$0xf]
    %v361 = vld [vmem:[#allocation5 + $0x438] sm:$0xf]
    %v362 = vld [vmem:[#allocation5 + $0x43c] sm:$0xf]
    %v363 = vld [vmem:[#allocation5 + $0x440] sm:$0xf]
    %v364 = vld [vmem:[#allocation5 + $0x444] sm:$0xf]
    %v365 = vld [vmem:[#allocation5 + $0x448] sm:$0xf]
    %v366 = vld [vmem:[#allocation5 + $0x44c] sm:$0xf]
    %v367 = vld [vmem:[#allocation5 + $0x450] sm:$0xf]
    %v368 = vld [vmem:[#allocation5 + $0x454] sm:$0xf]
    %v369 = vld [vmem:[#allocation5 + $0x458] sm:$0xf]
    %v370 = vld [vmem:[#allocation5 + $0x45c] sm:$0xf]
    %v371 = vld [vmem:[#allocation5 + $0x460] sm:$0xf]
    %v372 = vld [vmem:[#allocation5 + $0x464] sm:$0xf]
    %v373 = vld [vmem:[#allocation5 + $0x468] sm:$0xf]
    %v374 = vld [vmem:[#allocation5 + $0x46c] sm:$0xf]
    %v375 = vld [vmem:[#allocation5 + $0x470] sm:$0xf]
    %v376 = vld [vmem:[#allocation5 + $0x474] sm:$0xf]
    %v377 = vld [vmem:[#allocation5 + $0x478] sm:$0xf]
    %v378 = vld [vmem:[#allocation5 + $0x47c] sm:$0xf]
    %v379 = vld [vmem:[#allocation5 + $0x480] sm:$0xf]
    %v380 = vld [vmem:[#allocation5 + $0x484] sm:$0xf]
    %v381 = vld [vmem:[#allocation5 + $0x488] sm:$0xf]
    %v382 = vld [vmem:[#allocation5 + $0x48c] sm:$0xf]
    %v383 = vld [vmem:[#allocation5 + $0x490] sm:$0xf]
    %v384 = vld [vmem:[#allocation5 + $0x494] sm:$0xf]
    %v385 = vld [vmem:[#allocation5 + $0x498] sm:$0xf]
    %v386 = vld [vmem:[#allocation5 + $0x49c] sm:$0xf]
    %v387 = vld [vmem:[#allocation5 + $0x4a0] sm:$0xf]
    %v388 = vld [vmem:[#allocation5 + $0x4a4] sm:$0xf]
    %v389 = vld [vmem:[#allocation5 + $0x4a8] sm:$0xf]
    %v390 = vld [vmem:[#allocation5 + $0x4ac] sm:$0xf]
    %v391 = vld [vmem:[#allocation7] sm:$0x1]
    %v393 = vlaneseq
    %v394 = vshrl.u32 %v393, 7
    %v395 = vsub.s32 0, %v394
    %v396 = vrot.slane %v391, %v395
    %v698 = vunpack.c.l.b16 %v91
    %v699 = vunpack.c.l.b16 %v92
    %v700 = vunpack.c.l.b16 %v93
    %v701 = vunpack.c.l.b16 %v94
    %v702 = vunpack.c.l.b16 %v95
    %v703 = vunpack.c.l.b16 %v96
    %v704 = vunpack.c.l.b16 %v97
    %v705 = vunpack.c.l.b16 %v98
    %v706 = vunpack.c.l.b16 %v99
    %v707 = vunpack.c.l.b16 %v100
    %v708 = vunpack.c.l.b16 %v101
    %v709 = vunpack.c.l.b16 %v102
    %v710 = vunpack.c.l.b16 %v103
    %v711 = vunpack.c.l.b16 %v104
    %v712 = vunpack.c.l.b16 %v105
    %v713 = vunpack.c.l.b16 %v106
    %v714 = vunpack.c.l.b16 %v107
    %v715 = vunpack.c.l.b16 %v108
    %v716 = vunpack.c.l.b16 %v109
    %v717 = vunpack.c.l.b16 %v110
    %v718 = vunpack.c.l.b16 %v111
    %v719 = vunpack.c.l.b16 %v112
    %v720 = vunpack.c.l.b16 %v113
    %v721 = vunpack.c.l.b16 %v114
    %v722 = vunpack.c.l.b16 %v115
    %v723 = vunpack.c.l.b16 %v116
    %v724 = vunpack.c.l.b16 %v117
    %v725 = vunpack.c.l.b16 %v118
    %v726 = vunpack.c.l.b16 %v119
    %v727 = vunpack.c.l.b16 %v120
    %v728 = vunpack.c.l.b16 %v121
    %v729 = vunpack.c.l.b16 %v122
    %v730 = vunpack.c.l.b16 %v123
    %v731 = vunpack.c.l.b16 %v124
    %v732 = vunpack.c.l.b16 %v125
    %v733 = vunpack.c.l.b16 %v126
    %v734 = vunpack.c.l.b16 %v127
    %v735 = vunpack.c.l.b16 %v128
    %v736 = vunpack.c.l.b16 %v129
    %v737 = vunpack.c.l.b16 %v130
    %v738 = vunpack.c.l.b16 %v131
    %v739 = vunpack.c.l.b16 %v132
    %v740 = vunpack.c.l.b16 %v133
    %v741 = vunpack.c.l.b16 %v134
    %v742 = vunpack.c.l.b16 %v135
    %v743 = vunpack.c.l.b16 %v136
    %v744 = vunpack.c.l.b16 %v137
    %v745 = vunpack.c.l.b16 %v138
    %v746 = vunpack.c.l.b16 %v139
    %v747 = vunpack.c.l.b16 %v140
    %v748 = vunpack.c.l.b16 %v141
    %v749 = vunpack.c.l.b16 %v142
    %v750 = vunpack.c.l.b16 %v143
    %v751 = vunpack.c.l.b16 %v144
    %v752 = vunpack.c.l.b16 %v145
    %v753 = vunpack.c.l.b16 %v146
    %v754 = vunpack.c.l.b16 %v147
    %v755 = vunpack.c.l.b16 %v148
    %v756 = vunpack.c.l.b16 %v149
    %v757 = vunpack.c.l.b16 %v150
    %v758 = vunpack.c.l.b16 %v151
    %v759 = vunpack.c.l.b16 %v152
    %v760 = vunpack.c.l.b16 %v153
    %v761 = vunpack.c.l.b16 %v154
    %v762 = vunpack.c.l.b16 %v155
    %v763 = vunpack.c.l.b16 %v156
    %v764 = vunpack.c.l.b16 %v157
    %v765 = vunpack.c.l.b16 %v158
    %v766 = vunpack.c.l.b16 %v159
    %v767 = vunpack.c.l.b16 %v160
    %v768 = vunpack.c.l.b16 %v161
    %v769 = vunpack.c.l.b16 %v162
    %v770 = vunpack.c.l.b16 %v163
    %v771 = vunpack.c.l.b16 %v164
    %v772 = vunpack.c.l.b16 %v165
    %v773 = vunpack.c.l.b16 %v166
    %v774 = vunpack.c.l.b16 %v167
    %v775 = vunpack.c.l.b16 %v168
    %v776 = vunpack.c.l.b16 %v169
    %v777 = vunpack.c.l.b16 %v170
    %v778 = vunpack.c.l.b16 %v171
    %v779 = vunpack.c.l.b16 %v172
    %v780 = vunpack.c.l.b16 %v173
    %v781 = vunpack.c.l.b16 %v174
    %v782 = vunpack.c.l.b16 %v175
    %v783 = vunpack.c.l.b16 %v176
    %v784 = vunpack.c.l.b16 %v177
    %v785 = vunpack.c.l.b16 %v178
    %v786 = vunpack.c.l.b16 %v179
    %v787 = vunpack.c.l.b16 %v180
    %v788 = vunpack.c.l.b16 %v181
    %v789 = vunpack.c.l.b16 %v182
    %v790 = vunpack.c.l.b16 %v183
    %v791 = vunpack.c.l.b16 %v184
    %v792 = vunpack.c.l.b16 %v185
    %v793 = vunpack.c.l.b16 %v186
    %v794 = vunpack.c.l.b16 %v187
    %v795 = vunpack.c.l.b16 %v188
    %v796 = vunpack.c.l.b16 %v189
    %v797 = vunpack.c.l.b16 %v190
    %v798 = vunpack.c.l.b16 %v191
    %v799 = vunpack.c.l.b16 %v192
    %v800 = vunpack.c.l.b16 %v193
    %v801 = vunpack.c.l.b16 %v194
    %v802 = vunpack.c.l.b16 %v195
    %v803 = vunpack.c.l.b16 %v196
    %v804 = vunpack.c.l.b16 %v197
    %v805 = vunpack.c.l.b16 %v198
    %v806 = vunpack.c.l.b16 %v199
    %v807 = vunpack.c.l.b16 %v200
    %v808 = vunpack.c.l.b16 %v201
    %v809 = vunpack.c.l.b16 %v202
    %v810 = vunpack.c.l.b16 %v203
    %v811 = vunpack.c.l.b16 %v204
    %v812 = vunpack.c.l.b16 %v205
    %v813 = vunpack.c.l.b16 %v206
    %v814 = vunpack.c.l.b16 %v207
    %v815 = vunpack.c.l.b16 %v208
    %v816 = vunpack.c.l.b16 %v209
    %v817 = vunpack.c.l.b16 %v210
    %v818 = vunpack.c.l.b16 %v211
    %v819 = vunpack.c.l.b16 %v212
    %v820 = vunpack.c.l.b16 %v213
    %v821 = vunpack.c.l.b16 %v214
    %v822 = vunpack.c.l.b16 %v215
    %v823 = vunpack.c.l.b16 %v216
    %v824 = vunpack.c.l.b16 %v217
    %v825 = vunpack.c.l.b16 %v218
    %v826 = vunpack.c.l.b16 %v219
    %v827 = vunpack.c.l.b16 %v220
    %v828 = vunpack.c.l.b16 %v221
    %v829 = vunpack.c.l.b16 %v222
    %v830 = vunpack.c.l.b16 %v223
    %v831 = vunpack.c.l.b16 %v224
    %v832 = vunpack.c.l.b16 %v225
    %v833 = vunpack.c.l.b16 %v226
    %v834 = vunpack.c.l.b16 %v227
    %v835 = vunpack.c.l.b16 %v228
    %v836 = vunpack.c.l.b16 %v229
    %v837 = vunpack.c.l.b16 %v230
    %v838 = vunpack.c.l.b16 %v231
    %v839 = vunpack.c.l.b16 %v232
    %v840 = vunpack.c.l.b16 %v233
    %v841 = vunpack.c.l.b16 %v234
    %v842 = vunpack.c.l.b16 %v235
    %v843 = vunpack.c.l.b16 %v236
    %v844 = vunpack.c.l.b16 %v237
    %v845 = vunpack.c.l.b16 %v238
    %v846 = vunpack.c.l.b16 %v239
    %v847 = vunpack.c.l.b16 %v240
    %v848 = vunpack.c.l.b16 %v241
    %v849 = vunpack.c.l.b16 %v242
    %v850 = vunpack.c.l.b16 %v243
    %v851 = vunpack.c.l.b16 %v244
    %v852 = vunpack.c.l.b16 %v245
    %v853 = vunpack.c.l.b16 %v246
    %v854 = vunpack.c.l.b16 %v247
    %v855 = vunpack.c.l.b16 %v248
    %v856 = vunpack.c.l.b16 %v249
    %v857 = vunpack.c.l.b16 %v250
    %v858 = vunpack.c.l.b16 %v251
    %v859 = vunpack.c.l.b16 %v252
    %v860 = vunpack.c.l.b16 %v253
    %v861 = vunpack.c.l.b16 %v254
    %v862 = vunpack.c.l.b16 %v255
    %v863 = vunpack.c.l.b16 %v256
    %v864 = vunpack.c.l.b16 %v257
    %v865 = vunpack.c.l.b16 %v258
    %v866 = vunpack.c.l.b16 %v259
    %v867 = vunpack.c.l.b16 %v260
    %v868 = vunpack.c.l.b16 %v261
    %v869 = vunpack.c.l.b16 %v262
    %v870 = vunpack.c.l.b16 %v263
    %v871 = vunpack.c.l.b16 %v264
    %v872 = vunpack.c.l.b16 %v265
    %v873 = vunpack.c.l.b16 %v266
    %v874 = vunpack.c.l.b16 %v267
    %v875 = vunpack.c.l.b16 %v268
    %v876 = vunpack.c.l.b16 %v269
    %v877 = vunpack.c.l.b16 %v270
    %v878 = vunpack.c.l.b16 %v271
    %v879 = vunpack.c.l.b16 %v272
    %v880 = vunpack.c.l.b16 %v273
    %v881 = vunpack.c.l.b16 %v274
    %v882 = vunpack.c.l.b16 %v275
    %v883 = vunpack.c.l.b16 %v276
    %v884 = vunpack.c.l.b16 %v277
    %v885 = vunpack.c.l.b16 %v278
    %v886 = vunpack.c.l.b16 %v279
    %v887 = vunpack.c.l.b16 %v280
    %v888 = vunpack.c.l.b16 %v281
    %v889 = vunpack.c.l.b16 %v282
    %v890 = vunpack.c.l.b16 %v283
    %v891 = vunpack.c.l.b16 %v284
    %v892 = vunpack.c.l.b16 %v285
    %v893 = vunpack.c.l.b16 %v286
    %v894 = vunpack.c.l.b16 %v287
    %v895 = vunpack.c.l.b16 %v288
    %v896 = vunpack.c.l.b16 %v289
    %v897 = vunpack.c.l.b16 %v290
    %v898 = vunpack.c.l.b16 %v291
    %v899 = vunpack.c.l.b16 %v292
    %v900 = vunpack.c.l.b16 %v293
    %v901 = vunpack.c.l.b16 %v294
    %v902 = vunpack.c.l.b16 %v295
    %v903 = vunpack.c.l.b16 %v296
    %v904 = vunpack.c.l.b16 %v297
    %v905 = vunpack.c.l.b16 %v298
    %v906 = vunpack.c.l.b16 %v299
    %v907 = vunpack.c.l.b16 %v300
    %v908 = vunpack.c.l.b16 %v301
    %v909 = vunpack.c.l.b16 %v302
    %v910 = vunpack.c.l.b16 %v303
    %v911 = vunpack.c.l.b16 %v304
    %v912 = vunpack.c.l.b16 %v305
    %v913 = vunpack.c.l.b16 %v306
    %v914 = vunpack.c.l.b16 %v307
    %v915 = vunpack.c.l.b16 %v308
    %v916 = vunpack.c.l.b16 %v309
    %v917 = vunpack.c.l.b16 %v310
    %v918 = vunpack.c.l.b16 %v311
    %v919 = vunpack.c.l.b16 %v312
    %v920 = vunpack.c.l.b16 %v313
    %v921 = vunpack.c.l.b16 %v314
    %v922 = vunpack.c.l.b16 %v315
    %v923 = vunpack.c.l.b16 %v316
    %v924 = vunpack.c.l.b16 %v317
    %v925 = vunpack.c.l.b16 %v318
    %v926 = vunpack.c.l.b16 %v319
    %v927 = vunpack.c.l.b16 %v320
    %v928 = vunpack.c.l.b16 %v321
    %v929 = vunpack.c.l.b16 %v322
    %v930 = vunpack.c.l.b16 %v323
    %v931 = vunpack.c.l.b16 %v324
    %v932 = vunpack.c.l.b16 %v325
    %v933 = vunpack.c.l.b16 %v326
    %v934 = vunpack.c.l.b16 %v327
    %v935 = vunpack.c.l.b16 %v328
    %v936 = vunpack.c.l.b16 %v329
    %v937 = vunpack.c.l.b16 %v330
    %v938 = vunpack.c.l.b16 %v331
    %v939 = vunpack.c.l.b16 %v332
    %v940 = vunpack.c.l.b16 %v333
    %v941 = vunpack.c.l.b16 %v334
    %v942 = vunpack.c.l.b16 %v335
    %v943 = vunpack.c.l.b16 %v336
    %v944 = vunpack.c.l.b16 %v337
    %v945 = vunpack.c.l.b16 %v338
    %v946 = vunpack.c.l.b16 %v339
    %v947 = vunpack.c.l.b16 %v340
    %v948 = vunpack.c.l.b16 %v341
    %v949 = vunpack.c.l.b16 %v342
    %v950 = vunpack.c.l.b16 %v343
    %v951 = vunpack.c.l.b16 %v344
    %v952 = vunpack.c.l.b16 %v345
    %v953 = vunpack.c.l.b16 %v346
    %v954 = vunpack.c.l.b16 %v347
    %v955 = vunpack.c.l.b16 %v348
    %v956 = vunpack.c.l.b16 %v349
    %v957 = vunpack.c.l.b16 %v350
    %v958 = vunpack.c.l.b16 %v351
    %v959 = vunpack.c.l.b16 %v352
    %v960 = vunpack.c.l.b16 %v353
    %v961 = vunpack.c.l.b16 %v354
    %v962 = vunpack.c.l.b16 %v355
    %v963 = vunpack.c.l.b16 %v356
    %v964 = vunpack.c.l.b16 %v357
    %v965 = vunpack.c.l.b16 %v358
    %v966 = vunpack.c.l.b16 %v359
    %v967 = vunpack.c.l.b16 %v360
    %v968 = vunpack.c.l.b16 %v361
    %v969 = vunpack.c.l.b16 %v362
    %v970 = vunpack.c.l.b16 %v363
    %v971 = vunpack.c.l.b16 %v364
    %v972 = vunpack.c.l.b16 %v365
    %v973 = vunpack.c.l.b16 %v366
    %v974 = vunpack.c.l.b16 %v367
    %v975 = vunpack.c.l.b16 %v368
    %v976 = vunpack.c.l.b16 %v369
    %v977 = vunpack.c.l.b16 %v370
    %v978 = vunpack.c.l.b16 %v371
    %v979 = vunpack.c.l.b16 %v372
    %v980 = vunpack.c.l.b16 %v373
    %v981 = vunpack.c.l.b16 %v374
    %v982 = vunpack.c.l.b16 %v375
    %v983 = vunpack.c.l.b16 %v376
    %v984 = vunpack.c.l.b16 %v377
    %v985 = vunpack.c.l.b16 %v378
    %v986 = vunpack.c.l.b16 %v379
    %v987 = vunpack.c.l.b16 %v380
    %v988 = vunpack.c.l.b16 %v381
    %v989 = vunpack.c.l.b16 %v382
    %v990 = vunpack.c.l.b16 %v383
    %v991 = vunpack.c.l.b16 %v384
    %v992 = vunpack.c.l.b16 %v385
    %v993 = vunpack.c.l.b16 %v386
    %v994 = vunpack.c.l.b16 %v387
    %v995 = vunpack.c.l.b16 %v388
    %v996 = vunpack.c.l.b16 %v389
    %v997 = vunpack.c.l.b16 %v390
    %v998 = vpack.c.b16 %v699, %v698
    %v999 = vpack.c.b16 %v701, %v700
    %v1000 = vpack.c.b16 %v703, %v702
    %v1001 = vpack.c.b16 %v705, %v704
    %v1002 = vpack.c.b16 %v707, %v706
    %v1003 = vpack.c.b16 %v709, %v708
    %v1004 = vpack.c.b16 %v711, %v710
    %v1005 = vpack.c.b16 %v713, %v712
    %v1006 = vpack.c.b16 %v715, %v714
    %v1007 = vpack.c.b16 %v717, %v716
    %v1008 = vpack.c.b16 %v719, %v718
    %v1009 = vpack.c.b16 %v721, %v720
    %v1010 = vpack.c.b16 %v723, %v722
    %v1011 = vpack.c.b16 %v725, %v724
    %v1012 = vpack.c.b16 %v727, %v726
    %v1013 = vpack.c.b16 %v729, %v728
    %v1014 = vpack.c.b16 %v731, %v730
    %v1015 = vpack.c.b16 %v733, %v732
    %v1016 = vpack.c.b16 %v735, %v734
    %v1017 = vpack.c.b16 %v737, %v736
    %v1018 = vpack.c.b16 %v739, %v738
    %v1019 = vpack.c.b16 %v741, %v740
    %v1020 = vpack.c.b16 %v743, %v742
    %v1021 = vpack.c.b16 %v745, %v744
    %v1022 = vpack.c.b16 %v747, %v746
    %v1023 = vpack.c.b16 %v749, %v748
    %v1024 = vpack.c.b16 %v751, %v750
    %v1025 = vpack.c.b16 %v753, %v752
    %v1026 = vpack.c.b16 %v755, %v754
    %v1027 = vpack.c.b16 %v757, %v756
    %v1028 = vpack.c.b16 %v759, %v758
    %v1029 = vpack.c.b16 %v761, %v760
    %v1030 = vpack.c.b16 %v763, %v762
    %v1031 = vpack.c.b16 %v765, %v764
    %v1032 = vpack.c.b16 %v767, %v766
    %v1033 = vpack.c.b16 %v769, %v768
    %v1034 = vpack.c.b16 %v771, %v770
    %v1035 = vpack.c.b16 %v773, %v772
    %v1036 = vpack.c.b16 %v775, %v774
    %v1037 = vpack.c.b16 %v777, %v776
    %v1038 = vpack.c.b16 %v779, %v778
    %v1039 = vpack.c.b16 %v781, %v780
    %v1040 = vpack.c.b16 %v783, %v782
    %v1041 = vpack.c.b16 %v785, %v784
    %v1042 = vpack.c.b16 %v787, %v786
    %v1043 = vpack.c.b16 %v789, %v788
    %v1044 = vpack.c.b16 %v791, %v790
    %v1045 = vpack.c.b16 %v793, %v792
    %v1046 = vpack.c.b16 %v795, %v794
    %v1047 = vpack.c.b16 %v797, %v796
    %v1048 = vpack.c.b16 %v799, %v798
    %v1049 = vpack.c.b16 %v801, %v800
    %v1050 = vpack.c.b16 %v803, %v802
    %v1051 = vpack.c.b16 %v805, %v804
    %v1052 = vpack.c.b16 %v807, %v806
    %v1053 = vpack.c.b16 %v809, %v808
    %v1054 = vpack.c.b16 %v811, %v810
    %v1055 = vpack.c.b16 %v813, %v812
    %v1056 = vpack.c.b16 %v815, %v814
    %v1057 = vpack.c.b16 %v817, %v816
    %v1058 = vpack.c.b16 %v819, %v818
    %v1059 = vpack.c.b16 %v821, %v820
    %v1060 = vpack.c.b16 %v823, %v822
    %v1061 = vpack.c.b16 %v825, %v824
    %v1062 = vpack.c.b16 %v827, %v826
    %v1063 = vpack.c.b16 %v829, %v828
    %v1064 = vpack.c.b16 %v831, %v830
    %v1065 = vpack.c.b16 %v833, %v832
    %v1066 = vpack.c.b16 %v835, %v834
    %v1067 = vpack.c.b16 %v837, %v836
    %v1068 = vpack.c.b16 %v839, %v838
    %v1069 = vpack.c.b16 %v841, %v840
    %v1070 = vpack.c.b16 %v843, %v842
    %v1071 = vpack.c.b16 %v845, %v844
    %v1072 = vpack.c.b16 %v847, %v846
    %v1073 = vpack.c.b16 %v849, %v848
    %v1074 = vpack.c.b16 %v851, %v850
    %v1075 = vpack.c.b16 %v853, %v852
    %v1076 = vpack.c.b16 %v855, %v854
    %v1077 = vpack.c.b16 %v857, %v856
    %v1078 = vpack.c.b16 %v859, %v858
    %v1079 = vpack.c.b16 %v861, %v860
    %v1080 = vpack.c.b16 %v863, %v862
    %v1081 = vpack.c.b16 %v865, %v864
    %v1082 = vpack.c.b16 %v867, %v866
    %v1083 = vpack.c.b16 %v869, %v868
    %v1084 = vpack.c.b16 %v871, %v870
    %v1085 = vpack.c.b16 %v873, %v872
    %v1086 = vpack.c.b16 %v875, %v874
    %v1087 = vpack.c.b16 %v877, %v876
    %v1088 = vpack.c.b16 %v879, %v878
    %v1089 = vpack.c.b16 %v881, %v880
    %v1090 = vpack.c.b16 %v883, %v882
    %v1091 = vpack.c.b16 %v885, %v884
    %v1092 = vpack.c.b16 %v887, %v886
    %v1093 = vpack.c.b16 %v889, %v888
    %v1094 = vpack.c.b16 %v891, %v890
    %v1095 = vpack.c.b16 %v893, %v892
    %v1096 = vpack.c.b16 %v895, %v894
    %v1097 = vpack.c.b16 %v897, %v896
    %v1098 = vpack.c.b16 %v899, %v898
    %v1099 = vpack.c.b16 %v901, %v900
    %v1100 = vpack.c.b16 %v903, %v902
    %v1101 = vpack.c.b16 %v905, %v904
    %v1102 = vpack.c.b16 %v907, %v906
    %v1103 = vpack.c.b16 %v909, %v908
    %v1104 = vpack.c.b16 %v911, %v910
    %v1105 = vpack.c.b16 %v913, %v912
    %v1106 = vpack.c.b16 %v915, %v914
    %v1107 = vpack.c.b16 %v917, %v916
    %v1108 = vpack.c.b16 %v919, %v918
    %v1109 = vpack.c.b16 %v921, %v920
    %v1110 = vpack.c.b16 %v923, %v922
    %v1111 = vpack.c.b16 %v925, %v924
    %v1112 = vpack.c.b16 %v927, %v926
    %v1113 = vpack.c.b16 %v929, %v928
    %v1114 = vpack.c.b16 %v931, %v930
    %v1115 = vpack.c.b16 %v933, %v932
    %v1116 = vpack.c.b16 %v935, %v934
    %v1117 = vpack.c.b16 %v937, %v936
    %v1118 = vpack.c.b16 %v939, %v938
    %v1119 = vpack.c.b16 %v941, %v940
    %v1120 = vpack.c.b16 %v943, %v942
    %v1121 = vpack.c.b16 %v945, %v944
    %v1122 = vpack.c.b16 %v947, %v946
    %v1123 = vpack.c.b16 %v949, %v948
    %v1124 = vpack.c.b16 %v951, %v950
    %v1125 = vpack.c.b16 %v953, %v952
    %v1126 = vpack.c.b16 %v955, %v954
    %v1127 = vpack.c.b16 %v957, %v956
    %v1128 = vpack.c.b16 %v959, %v958
    %v1129 = vpack.c.b16 %v961, %v960
    %v1130 = vpack.c.b16 %v963, %v962
    %v1131 = vpack.c.b16 %v965, %v964
    %v1132 = vpack.c.b16 %v967, %v966
    %v1133 = vpack.c.b16 %v969, %v968
    %v1134 = vpack.c.b16 %v971, %v970
    %v1135 = vpack.c.b16 %v973, %v972
    %v1136 = vpack.c.b16 %v975, %v974
    %v1137 = vpack.c.b16 %v977, %v976
    %v1138 = vpack.c.b16 %v979, %v978
    %v1139 = vpack.c.b16 %v981, %v980
    %v1140 = vpack.c.b16 %v983, %v982
    %v1141 = vpack.c.b16 %v985, %v984
    %v1142 = vpack.c.b16 %v987, %v986
    %v1143 = vpack.c.b16 %v989, %v988
    %v1144 = vpack.c.b16 %v991, %v990
    %v1145 = vpack.c.b16 %v993, %v992
    %v1146 = vpack.c.b16 %v995, %v994
    %v1147 = vpack.c.b16 %v997, %v996
    %vm1298 = vcmask 785408
    %v1300 = vsel %vm1298, %v90, 0
    %1302 = vmatprep.subr.bf16.mxu0 0
    %1303 = vmatpush1.bf16.msra.mxu0 %v998
    %1304 = vmatprep.subr.bf16.mxu0 0
    %1305 = vmatpush1.bf16.msra.mxu0 %v999
    %1306 = vmatprep.subr.bf16.mxu0 0
    %1307 = vmatpush1.bf16.msra.mxu0 %v1000
    %1308 = vmatprep.subr.bf16.mxu0 0
    %1309 = vmatpush1.bf16.msra.mxu0 %v1001
    %1310 = vmatprep.subr.bf16.mxu0 0
    %1311 = vmatpush1.bf16.msra.mxu0 %v1002
    %1312 = vmatprep.subr.bf16.mxu0 0
    %1313 = vmatpush1.bf16.msra.mxu0 %v1003
    %1314 = vmatprep.subr.bf16.mxu0 0
    %1315 = vmatpush1.bf16.msra.mxu0 %v1004
    %1316 = vmatprep.subr.bf16.mxu0 0
    %1317 = vmatpush1.bf16.msra.mxu0 %v1005
    %1318 = vmatprep.subr.bf16.mxu0 0
    %1319 = vmatpush1.bf16.msra.mxu0 %v1006
    %1320 = vmatprep.subr.bf16.mxu0 0
    %1321 = vmatpush1.bf16.msra.mxu0 %v1007
    %1322 = vmatprep.subr.bf16.mxu0 0
    %1323 = vmatpush1.bf16.msra.mxu0 %v1008
    %1324 = vmatprep.subr.bf16.mxu0 0
    %1325 = vmatpush1.bf16.msra.mxu0 %v1009
    %1326 = vmatprep.subr.bf16.mxu0 0
    %1327 = vmatpush1.bf16.msra.mxu0 %v1010
    %1328 = vmatprep.subr.bf16.mxu0 0
    %1329 = vmatpush1.bf16.msra.mxu0 %v1011
    %1330 = vmatprep.subr.bf16.mxu0 0
    %1331 = vmatpush1.bf16.msra.mxu0 %v1012
    %1332 = vmatprep.subr.bf16.mxu0 0
    %1333 = vmatpush1.bf16.msra.mxu0 %v1013
    %1334 = vmatprep.mubr.bf16.mxu0 %v73
    %1335 = vmatmul.mubr.bf16.gmra.mrb[0].mxu0 %v72
    %v1336 = vpop.f32.mrb[0].mxu0
    %v1337 = vadd.f32 %v396, %v1336
    %v1338 = vpop.f32.mrb[0].mxu0
    %v1339 = vpop.f32.mrb[0].mxu0
    %v1340 = vpop.f32.mrb[0].mxu0
    %1341 = vdwg.mxu0
    %1342 = vmatprep.subr.bf16.mxu0 0
    %1343 = vmatpush1.bf16.msra.mxu0 %v1014
    %1344 = vmatprep.subr.bf16.mxu0 0
    %1345 = vmatpush1.bf16.msra.mxu0 %v1015
    %1346 = vmatprep.subr.bf16.mxu0 0
    %1347 = vmatpush1.bf16.msra.mxu0 %v1016
    %1348 = vmatprep.subr.bf16.mxu0 0
    %1349 = vmatpush1.bf16.msra.mxu0 %v1017
    %1350 = vmatprep.subr.bf16.mxu0 0
    %1351 = vmatpush1.bf16.msra.mxu0 %v1018
    %1352 = vmatprep.subr.bf16.mxu0 0
    %1353 = vmatpush1.bf16.msra.mxu0 %v1019
    %1354 = vmatprep.subr.bf16.mxu0 0
    %1355 = vmatpush1.bf16.msra.mxu0 %v1020
    %1356 = vmatprep.subr.bf16.mxu0 0
    %1357 = vmatpush1.bf16.msra.mxu0 %v1021
    %1358 = vmatprep.subr.bf16.mxu0 0
    %1359 = vmatpush1.bf16.msra.mxu0 %v1022
    %1360 = vmatprep.subr.bf16.mxu0 0
    %1361 = vmatpush1.bf16.msra.mxu0 %v1023
    %1362 = vmatprep.subr.bf16.mxu0 0
    %1363 = vmatpush1.bf16.msra.mxu0 %v1024
    %1364 = vmatprep.subr.bf16.mxu0 0
    %1365 = vmatpush1.bf16.msra.mxu0 %v1025
    %1366 = vmatprep.subr.bf16.mxu0 0
    %1367 = vmatpush1.bf16.msra.mxu0 %v1026
    %1368 = vmatprep.subr.bf16.mxu0 0
    %1369 = vmatpush1.bf16.msra.mxu0 %v1027
    %1370 = vmatprep.subr.bf16.mxu0 0
    %1371 = vmatpush1.bf16.msra.mxu0 %v1028
    %1372 = vmatprep.subr.bf16.mxu0 0
    %1373 = vmatpush1.bf16.msra.mxu0 %v1029
    %1374 = vmatprep.mubr.bf16.mxu0 %v75
    %1375 = vmatmul.mubr.bf16.gmra.mrb[0].mxu0 %v74
    %v1376 = vpop.f32.mrb[0].mxu0
    %v1377 = vadd.f32 %v1337, %v1376
    %v1378 = vpop.f32.mrb[0].mxu0
    %v1379 = vpop.f32.mrb[0].mxu0
    %v1380 = vpop.f32.mrb[0].mxu0
    %1381 = vdwg.mxu0
    %1382 = vmatprep.subr.bf16.mxu0 0
    %1383 = vmatpush1.bf16.msra.mxu0 %v1030
    %1384 = vmatprep.subr.bf16.mxu0 0
    %1385 = vmatpush1.bf16.msra.mxu0 %v1031
    %1386 = vmatprep.subr.bf16.mxu0 0
    %1387 = vmatpush1.bf16.msra.mxu0 %v1032
    %1388 = vmatprep.subr.bf16.mxu0 0
    %1389 = vmatpush1.bf16.msra.mxu0 %v1033
    %1390 = vmatprep.subr.bf16.mxu0 0
    %1391 = vmatpush1.bf16.msra.mxu0 %v1034
    %1392 = vmatprep.subr.bf16.mxu0 0
    %1393 = vmatpush1.bf16.msra.mxu0 %v1035
    %1394 = vmatprep.subr.bf16.mxu0 0
    %1395 = vmatpush1.bf16.msra.mxu0 %v1036
    %1396 = vmatprep.subr.bf16.mxu0 0
    %1397 = vmatpush1.bf16.msra.mxu0 %v1037
    %1398 = vmatprep.subr.bf16.mxu0 0
    %1399 = vmatpush1.bf16.msra.mxu0 %v1038
    %1400 = vmatprep.subr.bf16.mxu0 0
    %1401 = vmatpush1.bf16.msra.mxu0 %v1039
    %1402 = vmatprep.subr.bf16.mxu0 0
    %1403 = vmatpush1.bf16.msra.mxu0 %v1040
    %1404 = vmatprep.subr.bf16.mxu0 0
    %1405 = vmatpush1.bf16.msra.mxu0 %v1041
    %1406 = vmatprep.subr.bf16.mxu0 0
    %1407 = vmatpush1.bf16.msra.mxu0 %v1042
    %1408 = vmatprep.subr.bf16.mxu0 0
    %1409 = vmatpush1.bf16.msra.mxu0 %v1043
    %1410 = vmatprep.subr.bf16.mxu0 0
    %1411 = vmatpush1.bf16.msra.mxu0 %v1044
    %1412 = vmatprep.subr.bf16.mxu0 0
    %1413 = vmatpush1.bf16.msra.mxu0 %v1045
    %1414 = vmatprep.mubr.bf16.mxu0 %v77
    %1415 = vmatmul.mubr.bf16.gmra.mrb[0].mxu0 %v76
    %v1416 = vpop.f32.mrb[0].mxu0
    %v1417 = vadd.f32 %v1377, %v1416
    %v1418 = vpop.f32.mrb[0].mxu0
    %v1419 = vpop.f32.mrb[0].mxu0
    %v1420 = vpop.f32.mrb[0].mxu0
    %1421 = vdwg.mxu0
    %1422 = vmatprep.subr.bf16.mxu0 0
    %1423 = vmatpush1.bf16.msra.mxu0 %v1046
    %1424 = vmatprep.subr.bf16.mxu0 0
    %1425 = vmatpush1.bf16.msra.mxu0 %v1047
    %1426 = vmatprep.subr.bf16.mxu0 0
    %1427 = vmatpush1.bf16.msra.mxu0 %v1048
    %1428 = vmatprep.subr.bf16.mxu0 0
    %1429 = vmatpush1.bf16.msra.mxu0 %v1049
    %1430 = vmatprep.subr.bf16.mxu0 0
    %1431 = vmatpush1.bf16.msra.mxu0 %v1050
    %1432 = vmatprep.subr.bf16.mxu0 0
    %1433 = vmatpush1.bf16.msra.mxu0 %v1051
    %1434 = vmatprep.subr.bf16.mxu0 0
    %1435 = vmatpush1.bf16.msra.mxu0 %v1052
    %1436 = vmatprep.subr.bf16.mxu0 0
    %1437 = vmatpush1.bf16.msra.mxu0 %v1053
    %1438 = vmatprep.subr.bf16.mxu0 0
    %1439 = vmatpush1.bf16.msra.mxu0 %v1054
    %1440 = vmatprep.subr.bf16.mxu0 0
    %1441 = vmatpush1.bf16.msra.mxu0 %v1055
    %1442 = vmatprep.subr.bf16.mxu0 0
    %1443 = vmatpush1.bf16.msra.mxu0 %v1056
    %1444 = vmatprep.subr.bf16.mxu0 0
    %1445 = vmatpush1.bf16.msra.mxu0 %v1057
    %1446 = vmatprep.subr.bf16.mxu0 0
    %1447 = vmatpush1.bf16.msra.mxu0 %v1058
    %1448 = vmatprep.subr.bf16.mxu0 0
    %1449 = vmatpush1.bf16.msra.mxu0 %v1059
    %1450 = vmatprep.subr.bf16.mxu0 0
    %1451 = vmatpush1.bf16.msra.mxu0 %v1060
    %1452 = vmatprep.subr.bf16.mxu0 0
    %1453 = vmatpush1.bf16.msra.mxu0 %v1061
    %1454 = vmatprep.mubr.bf16.mxu0 %v79
    %1455 = vmatmul.mubr.bf16.gmra.mrb[0].mxu0 %v78
    %v1456 = vpop.f32.mrb[0].mxu0
    %v1457 = vadd.f32 %v1417, %v1456
    %v1458 = vpop.f32.mrb[0].mxu0
    %v1459 = vpop.f32.mrb[0].mxu0
    %v1460 = vpop.f32.mrb[0].mxu0
    %1461 = vdwg.mxu0
    %1462 = vmatprep.subr.bf16.mxu0 0
    %1463 = vmatpush1.bf16.msra.mxu0 %v1062
    %1464 = vmatprep.subr.bf16.mxu0 0
    %1465 = vmatpush1.bf16.msra.mxu0 %v1063
    %1466 = vmatprep.subr.bf16.mxu0 0
    %1467 = vmatpush1.bf16.msra.mxu0 %v1064
    %1468 = vmatprep.subr.bf16.mxu0 0
    %1469 = vmatpush1.bf16.msra.mxu0 %v1065
    %1470 = vmatprep.subr.bf16.mxu0 0
    %1471 = vmatpush1.bf16.msra.mxu0 %v1066
    %1472 = vmatprep.subr.bf16.mxu0 0
    %1473 = vmatpush1.bf16.msra.mxu0 %v1067
    %1474 = vmatprep.subr.bf16.mxu0 0
    %1475 = vmatpush1.bf16.msra.mxu0 %v1068
    %1476 = vmatprep.subr.bf16.mxu0 0
    %1477 = vmatpush1.bf16.msra.mxu0 %v1069
    %1478 = vmatprep.subr.bf16.mxu0 0
    %1479 = vmatpush1.bf16.msra.mxu0 %v1070
    %1480 = vmatprep.subr.bf16.mxu0 0
    %1481 = vmatpush1.bf16.msra.mxu0 %v1071
    %1482 = vmatprep.subr.bf16.mxu0 0
    %1483 = vmatpush1.bf16.msra.mxu0 %v1072
    %1484 = vmatprep.subr.bf16.mxu0 0
    %1485 = vmatpush1.bf16.msra.mxu0 %v1073
    %1486 = vmatprep.subr.bf16.mxu0 0
    %1487 = vmatpush1.bf16.msra.mxu0 %v1074
    %1488 = vmatprep.subr.bf16.mxu0 0
    %1489 = vmatpush1.bf16.msra.mxu0 %v1075
    %1490 = vmatprep.subr.bf16.mxu0 0
    %1491 = vmatpush1.bf16.msra.mxu0 %v1076
    %1492 = vmatprep.subr.bf16.mxu0 0
    %1493 = vmatpush1.bf16.msra.mxu0 %v1077
    %1494 = vmatprep.mubr.bf16.mxu0 %v81
    %1495 = vmatmul.mubr.bf16.gmra.mrb[0].mxu0 %v80
    %v1496 = vpop.f32.mrb[0].mxu0
    %v1497 = vadd.f32 %v1457, %v1496
    %v1498 = vpop.f32.mrb[0].mxu0
    %v1499 = vpop.f32.mrb[0].mxu0
    %v1500 = vpop.f32.mrb[0].mxu0
    %1501 = vdwg.mxu0
    %1502 = vmatprep.subr.bf16.mxu0 0
    %1503 = vmatpush1.bf16.msra.mxu0 %v1078
    %1504 = vmatprep.subr.bf16.mxu0 0
    %1505 = vmatpush1.bf16.msra.mxu0 %v1079
    %1506 = vmatprep.subr.bf16.mxu0 0
    %1507 = vmatpush1.bf16.msra.mxu0 %v1080
    %1508 = vmatprep.subr.bf16.mxu0 0
    %1509 = vmatpush1.bf16.msra.mxu0 %v1081
    %1510 = vmatprep.subr.bf16.mxu0 0
    %1511 = vmatpush1.bf16.msra.mxu0 %v1082
    %1512 = vmatprep.subr.bf16.mxu0 0
    %1513 = vmatpush1.bf16.msra.mxu0 %v1083
    %1514 = vmatprep.subr.bf16.mxu0 0
    %1515 = vmatpush1.bf16.msra.mxu0 %v1084
    %1516 = vmatprep.subr.bf16.mxu0 0
    %1517 = vmatpush1.bf16.msra.mxu0 %v1085
    %1518 = vmatprep.subr.bf16.mxu0 0
    %1519 = vmatpush1.bf16.msra.mxu0 %v1086
    %1520 = vmatprep.subr.bf16.mxu0 0
    %1521 = vmatpush1.bf16.msra.mxu0 %v1087
    %1522 = vmatprep.subr.bf16.mxu0 0
    %1523 = vmatpush1.bf16.msra.mxu0 %v1088
    %1524 = vmatprep.subr.bf16.mxu0 0
    %1525 = vmatpush1.bf16.msra.mxu0 %v1089
    %1526 = vmatprep.subr.bf16.mxu0 0
    %1527 = vmatpush1.bf16.msra.mxu0 %v1090
    %1528 = vmatprep.subr.bf16.mxu0 0
    %1529 = vmatpush1.bf16.msra.mxu0 %v1091
    %1530 = vmatprep.subr.bf16.mxu0 0
    %1531 = vmatpush1.bf16.msra.mxu0 %v1092
    %1532 = vmatprep.subr.bf16.mxu0 0
    %1533 = vmatpush1.bf16.msra.mxu0 %v1093
    %1534 = vmatprep.mubr.bf16.mxu0 %v83
    %1535 = vmatmul.mubr.bf16.gmra.mrb[0].mxu0 %v82
    %v1536 = vpop.f32.mrb[0].mxu0
    %v1537 = vadd.f32 %v1497, %v1536
    %v1538 = vpop.f32.mrb[0].mxu0
    %v1539 = vpop.f32.mrb[0].mxu0
    %v1540 = vpop.f32.mrb[0].mxu0
    %1541 = vdwg.mxu0
    %1542 = vmatprep.subr.bf16.mxu0 0
    %1543 = vmatpush1.bf16.msra.mxu0 %v1094
    %1544 = vmatprep.subr.bf16.mxu0 0
    %1545 = vmatpush1.bf16.msra.mxu0 %v1095
    %1546 = vmatprep.subr.bf16.mxu0 0
    %1547 = vmatpush1.bf16.msra.mxu0 %v1096
    %1548 = vmatprep.subr.bf16.mxu0 0
    %1549 = vmatpush1.bf16.msra.mxu0 %v1097
    %1550 = vmatprep.subr.bf16.mxu0 0
    %1551 = vmatpush1.bf16.msra.mxu0 %v1098
    %1552 = vmatprep.subr.bf16.mxu0 0
    %1553 = vmatpush1.bf16.msra.mxu0 %v1099
    %1554 = vmatprep.subr.bf16.mxu0 0
    %1555 = vmatpush1.bf16.msra.mxu0 %v1100
    %1556 = vmatprep.subr.bf16.mxu0 0
    %1557 = vmatpush1.bf16.msra.mxu0 %v1101
    %1558 = vmatprep.subr.bf16.mxu0 0
    %1559 = vmatpush1.bf16.msra.mxu0 %v1102
    %1560 = vmatprep.subr.bf16.mxu0 0
    %1561 = vmatpush1.bf16.msra.mxu0 %v1103
    %1562 = vmatprep.subr.bf16.mxu0 0
    %1563 = vmatpush1.bf16.msra.mxu0 %v1104
    %1564 = vmatprep.subr.bf16.mxu0 0
    %1565 = vmatpush1.bf16.msra.mxu0 %v1105
    %1566 = vmatprep.subr.bf16.mxu0 0
    %1567 = vmatpush1.bf16.msra.mxu0 %v1106
    %1568 = vmatprep.subr.bf16.mxu0 0
    %1569 = vmatpush1.bf16.msra.mxu0 %v1107
    %1570 = vmatprep.subr.bf16.mxu0 0
    %1571 = vmatpush1.bf16.msra.mxu0 %v1108
    %1572 = vmatprep.subr.bf16.mxu0 0
    %1573 = vmatpush1.bf16.msra.mxu0 %v1109
    %1574 = vmatprep.mubr.bf16.mxu0 %v85
    %1575 = vmatmul.mubr.bf16.gmra.mrb[0].mxu0 %v84
    %v1576 = vpop.f32.mrb[0].mxu0
    %v1577 = vadd.f32 %v1537, %v1576
    %v1578 = vpop.f32.mrb[0].mxu0
    %v1579 = vpop.f32.mrb[0].mxu0
    %v1580 = vpop.f32.mrb[0].mxu0
    %1581 = vdwg.mxu0
    %1582 = vmatprep.subr.bf16.mxu0 0
    %1583 = vmatpush1.bf16.msra.mxu0 %v1110
    %1584 = vmatprep.subr.bf16.mxu0 0
    %1585 = vmatpush1.bf16.msra.mxu0 %v1111
    %1586 = vmatprep.subr.bf16.mxu0 0
    %1587 = vmatpush1.bf16.msra.mxu0 %v1112
    %1588 = vmatprep.subr.bf16.mxu0 0
    %1589 = vmatpush1.bf16.msra.mxu0 %v1113
    %1590 = vmatprep.subr.bf16.mxu0 0
    %1591 = vmatpush1.bf16.msra.mxu0 %v1114
    %1592 = vmatprep.subr.bf16.mxu0 0
    %1593 = vmatpush1.bf16.msra.mxu0 %v1115
    %1594 = vmatprep.subr.bf16.mxu0 0
    %1595 = vmatpush1.bf16.msra.mxu0 %v1116
    %1596 = vmatprep.subr.bf16.mxu0 0
    %1597 = vmatpush1.bf16.msra.mxu0 %v1117
    %1598 = vmatprep.subr.bf16.mxu0 0
    %1599 = vmatpush1.bf16.msra.mxu0 %v1118
    %1600 = vmatprep.subr.bf16.mxu0 0
    %1601 = vmatpush1.bf16.msra.mxu0 %v1119
    %1602 = vmatprep.subr.bf16.mxu0 0
    %1603 = vmatpush1.bf16.msra.mxu0 %v1120
    %1604 = vmatprep.subr.bf16.mxu0 0
    %1605 = vmatpush1.bf16.msra.mxu0 %v1121
    %1606 = vmatprep.subr.bf16.mxu0 0
    %1607 = vmatpush1.bf16.msra.mxu0 %v1122
    %1608 = vmatprep.subr.bf16.mxu0 0
    %1609 = vmatpush1.bf16.msra.mxu0 %v1123
    %1610 = vmatprep.subr.bf16.mxu0 0
    %1611 = vmatpush1.bf16.msra.mxu0 %v1124
    %1612 = vmatprep.subr.bf16.mxu0 0
    %1613 = vmatpush1.bf16.msra.mxu0 %v1125
    %1614 = vmatprep.mubr.bf16.mxu0 %v87
    %1615 = vmatmul.mubr.bf16.gmra.mrb[0].mxu0 %v86
    %v1616 = vpop.f32.mrb[0].mxu0
    %v1617 = vadd.f32 %v1577, %v1616
    %v1618 = vpop.f32.mrb[0].mxu0
    %v1619 = vpop.f32.mrb[0].mxu0
    %v1620 = vpop.f32.mrb[0].mxu0
    %1621 = vdwg.mxu0
    %1622 = vmatprep.subr.bf16.mxu0 0
    %1623 = vmatpush1.bf16.msra.mxu0 %v1126
    %1624 = vmatprep.subr.bf16.mxu0 0
    %1625 = vmatpush1.bf16.msra.mxu0 %v1127
    %1626 = vmatprep.subr.bf16.mxu0 0
    %1627 = vmatpush1.bf16.msra.mxu0 %v1128
    %1628 = vmatprep.subr.bf16.mxu0 0
    %1629 = vmatpush1.bf16.msra.mxu0 %v1129
    %1630 = vmatprep.subr.bf16.mxu0 0
    %1631 = vmatpush1.bf16.msra.mxu0 %v1130
    %1632 = vmatprep.subr.bf16.mxu0 0
    %1633 = vmatpush1.bf16.msra.mxu0 %v1131
    %1634 = vmatprep.subr.bf16.mxu0 0
    %1635 = vmatpush1.bf16.msra.mxu0 %v1132
    %1636 = vmatprep.subr.bf16.mxu0 0
    %1637 = vmatpush1.bf16.msra.mxu0 %v1133
    %1638 = vmatprep.subr.bf16.mxu0 0
    %1639 = vmatpush1.bf16.msra.mxu0 %v1134
    %1640 = vmatprep.subr.bf16.mxu0 0
    %1641 = vmatpush1.bf16.msra.mxu0 %v1135
    %1642 = vmatprep.subr.bf16.mxu0 0
    %1643 = vmatpush1.bf16.msra.mxu0 %v1136
    %1644 = vmatprep.subr.bf16.mxu0 0
    %1645 = vmatpush1.bf16.msra.mxu0 %v1137
    %1646 = vmatprep.subr.bf16.mxu0 0
    %1647 = vmatpush1.bf16.msra.mxu0 %v1138
    %1648 = vmatprep.subr.bf16.mxu0 0
    %1649 = vmatpush1.bf16.msra.mxu0 %v1139
    %1650 = vmatprep.subr.bf16.mxu0 0
    %1651 = vmatpush1.bf16.msra.mxu0 %v1140
    %1652 = vmatprep.subr.bf16.mxu0 0
    %1653 = vmatpush1.bf16.msra.mxu0 %v1141
    %1654 = vmatprep.mubr.bf16.mxu0 %v89
    %1655 = vmatmul.mubr.bf16.gmra.mrb[0].mxu0 %v88
    %v1656 = vpop.f32.mrb[0].mxu0
    %v1657 = vadd.f32 %v1617, %v1656
    %v1658 = vpop.f32.mrb[0].mxu0
    %v1659 = vpop.f32.mrb[0].mxu0
    %v1660 = vpop.f32.mrb[0].mxu0
    %1661 = vdwg.mxu0
    %1662 = vmatprep.subr.bf16.mxu0 0
    %1663 = vmatpush1.bf16.msra.mxu0 %v1142
    %1664 = vmatprep.subr.bf16.mxu0 0
    %1665 = vmatpush1.bf16.msra.mxu0 %v1143
    %1666 = vmatprep.subr.bf16.mxu0 0
    %1667 = vmatpush1.bf16.msra.mxu0 %v1144
    %1668 = vmatprep.subr.bf16.mxu0 0
    %1669 = vmatpush1.bf16.msra.mxu0 %v1145
    %1670 = vmatprep.subr.bf16.mxu0 0
    %1671 = vmatpush1.bf16.msra.mxu0 %v1146
    %1672 = vmatprep.subr.bf16.mxu0 0
    %1673 = vmatpush1.bf16.msra.mxu0 %v1147
    %1674 = vmatprep.subr.bf16.mxu0 0
    %1675 = vmatpush1.bf16.msra.mxu0 0
    %1676 = vmatprep.subr.bf16.mxu0 0
    %1677 = vmatpush1.bf16.msra.mxu0 0
    %1678 = vmatprep.subr.bf16.mxu0 0
    %1679 = vmatpush1.bf16.msra.mxu0 0
    %1680 = vmatprep.subr.bf16.mxu0 0
    %1681 = vmatpush1.bf16.msra.mxu0 0
    %1682 = vmatprep.subr.bf16.mxu0 0
    %1683 = vmatpush1.bf16.msra.mxu0 0
    %1684 = vmatprep.subr.bf16.mxu0 0
    %1685 = vmatpush1.bf16.msra.mxu0 0
    %1686 = vmatprep.subr.bf16.mxu0 0
    %1687 = vmatpush1.bf16.msra.mxu0 0
    %1688 = vmatprep.subr.bf16.mxu0 0
    %1689 = vmatpush1.bf16.msra.mxu0 0
    %1690 = vmatprep.subr.bf16.mxu0 0
    %1691 = vmatpush1.bf16.msra.mxu0 0
    %1692 = vmatprep.subr.bf16.mxu0 0
    %1693 = vmatpush1.bf16.msra.mxu0 0
    %1694 = vmatprep.mubr.bf16.mxu0 0
    %1695 = vmatmul.mubr.bf16.gmra.mrb[0].mxu0 %v1300
    %v1696 = vpop.f32.mrb[0].mxu0
    %v1697 = vadd.f32 %v1657, %v1696
    %v1698 = vpop.f32.mrb[0].mxu0
    %v1699 = vpop.f32.mrb[0].mxu0
    %v1700 = vpop.f32.mrb[0].mxu0
    %1701 = vdwg.mxu0
    %v1702 = vmax.f32 %v1697, 0.0
    %1703 = vst [vmem:[#allocation8] sm:$0xff] %v1702
    // Predicated region
    $region26: #{skipthoughts_embedding_pallas.1} parent=1 // pred_check
      _
    $region27: #{skipthoughts_embedding_pallas.1} parent=1 // pred_check_branch
      %1705 = sbr.rel (0) target = $region29
    $region28: #{skipthoughts_embedding_pallas.1} parent=1 // pred_region
      %s1707 = ssub.s32 128, 128
      %1708 = vsyncadd [#allocation4], %s1707
      %s1710 = sshll.u32 [#allocation8], 4
      %s1711 = int_to_ptr.vmem [resolvable:$true] %s1710
      %1713 = dma.vmem_to_hbm [thread:$0]  %s1711, 128, %s3, [#allocation4]
    $region29: #{skipthoughts_embedding_pallas.1} parent=1 // pred_fallthru
      _
    // Predicated region
    $region30: #{skipthoughts_embedding_pallas.1} parent=1 // pred_check
      _
    $region31: #{skipthoughts_embedding_pallas.1} parent=1 // pred_check_branch
      %1715 = sbr.rel (0) target = $region33
    $region32: #{skipthoughts_embedding_pallas.1} parent=1 // pred_region
      %1716 = dma.done [#allocation4], 128
    $region33: #{skipthoughts_embedding_pallas.1} parent=1 // pred_fallthru
      _
    %1717 = vsyncpa [#allocation3], 1
    %1718 = vsyncpa [#allocation6], 1
    %1719 = vsyncpa [#allocation4], 1

</llo_original>
